<compile_context>
chip_gen: v6e
topology: v6e:2x2x1
jax: 0.10.0
libtpu: 0.0.40
codegen_flags: <defaults>
</compile_context>

<pallas_src>
import functools

import numpy as np
import jax
import jax.numpy as jnp
from jax.experimental import pallas as pl
from jax.experimental.pallas import tpu as pltpu


# ----------------------------- config -----------------------------------
class Config:
    NUM_CLASSES = 8
    FOCAL_ALPHA = [0.25, 0.5, 0.75, 1.0, 0.25, 0.5, 0.75, 1.0]  # length == NUM_CLASSES
    FOCAL_GAMMA = 2.0
    LABEL_SMOOTHING = 0.1
    DEVICE = None  # unused in JAX


# ----------------------------- helpers -----------------------------------
def _round_up(x, m):
    return ((x + m - 1) // m) * m


def _pow_static(x, gamma):
    """x ** gamma with an integer fast path (plain VPU multiplies).

    Falls back to jnp.power (EUP log+exp) only for non-integer gamma.
    """
    g = float(gamma)
    if g == int(g) and 0 <= int(g) <= 8:
        n = int(g)
        if n == 0:
            return jnp.ones_like(x)
        r = x
        for _ in range(n - 1):
            r = r * x
        return r
    return jnp.power(x, g)


def _write_partial(out_ref, focal):
    """Reduce per-sample focal (1, TB) to a per-tile scalar, stored in lane 0 of a
    lane-dense (1, 128) output block (the wrapper sums all partials)."""
    total = jnp.sum(focal, axis=1, keepdims=True)                       # (1, 1)
    lane = jax.lax.broadcasted_iota(jnp.int32, (1, 128), 1)
    out_ref[...] = jnp.where(lane == 0, total, 0.0)


def _masked_store(out_ref, focal, batch, tile_b, mask_last):
    """Store per-tile partial sum; only the final tile pays for the padding mask."""
    if mask_last:
        i = pl.program_id(0)
        last = pl.num_programs(0) - 1

        @pl.when(i == last)
        def _():
            col = i * tile_b + jax.lax.broadcasted_iota(jnp.int32, focal.shape, 1)
            # Mask BEFORE the reduction so padded columns never enter the sum.
            _write_partial(out_ref, jnp.where(col < batch, focal, 0.0))

        @pl.when(i != last)
        def _():
            _write_partial(out_ref, focal)
    else:
        _write_partial(out_ref, focal)


# ----------------------------- kernels -----------------------------------
def focal_hard_kernel(logits_ref, tgt_ref, out_ref, *, alpha, gamma,
                      label_smoothing, batch, tile_b, mask_last):
    logits = logits_ref[...].astype(jnp.float32)     # (C, TB)  batch on lanes
    tgt = tgt_ref[...]                               # (1, TB)  int32
    num_classes = logits.shape[0]

    # log-sum-exp over the class (sublane) axis.
    m = jnp.max(logits, axis=0, keepdims=True)                                # (1, TB)
    lse = m + jnp.log(jnp.sum(jnp.exp(logits - m), axis=0, keepdims=True))    # (1, TB)

    # One-hot selection along sublanes (C is tiny).
    row = jax.lax.broadcasted_iota(jnp.int32, logits.shape, 0)                # (C, TB)
    onehot = (row == tgt).astype(jnp.float32)                                 # (C, TB)
    logit_t = jnp.sum(onehot * logits, axis=0, keepdims=True)                 # (1, TB)
    sum_logits = jnp.sum(logits, axis=0, keepdims=True)                       # (1, TB)

    # alpha is a compile-time constant -> per-class select chain on (1, TB).
    alpha_t = jnp.full(tgt.shape, alpha[0], dtype=jnp.float32)
    for k in range(1, num_classes):
        alpha_t = jnp.where(tgt == k, jnp.float32(alpha[k]), alpha_t)

    # F.cross_entropy with label smoothing, without materializing log_probs.
    ce = (lse
          - (1.0 - label_smoothing) * logit_t
          - (label_smoothing / num_classes) * sum_logits)                     # (1, TB)

    pt = jnp.exp(-ce)
    w = jnp.maximum(1.0 - pt, 0.0)          # clamp so pow of a tiny negative never NaNs
    focal = alpha_t * _pow_static(w, gamma) * ce                              # (1, TB)

    _masked_store(out_ref, focal, batch, tile_b, mask_last)


def focal_soft_kernel(logits_ref, tgt_ref, out_ref, *, alpha, gamma,
                      batch, tile_b, mask_last):
    logits = logits_ref[...].astype(jnp.float32)     # (C, TB)
    t = tgt_ref[...].astype(jnp.float32)             # (C, TB)
    num_classes = logits.shape[0]

    m = jnp.max(logits, axis=0, keepdims=True)                                # (1, TB)
    e = jnp.exp(logits - m)                                                   # (C, TB)
    sum_e = jnp.sum(e, axis=0, keepdims=True)                                 # (1, TB)
    lse = m + jnp.log(sum_e)                                                  # (1, TB)

    sum_t = jnp.sum(t, axis=0, keepdims=True)                                 # (1, TB)
    ce = sum_t * lse - jnp.sum(t * logits, axis=0, keepdims=True)             # (1, TB)
    pt = jnp.sum(t * e, axis=0, keepdims=True) / sum_e                        # (1, TB)

    # Constant alpha column built from static scalars (no VMEM input).
    ridx = jax.lax.broadcasted_iota(jnp.int32, (num_classes, 1), 0)
    acol = jnp.full((num_classes, 1), alpha[0], dtype=jnp.float32)
    for k in range(1, num_classes):
        acol = jnp.where(ridx == k, jnp.float32(alpha[k]), acol)
    alpha_t = jnp.sum(t * acol, axis=0, keepdims=True)                        # (1, TB)

    w = jnp.maximum(1.0 - pt, 0.0)
    focal = alpha_t * _pow_static(w, gamma) * ce                              # (1, TB)

    _masked_store(out_ref, focal, batch, tile_b, mask_last)


# ----------------------------- wrapper -----------------------------------
def advanced_loss(inputs, targets, focal_alpha, focal_gamma, label_smoothing,
                  *, max_tile_b=32768):
    """Pallas implementation of AdvancedLoss.forward.

    inputs:  (B, C) float logits
    targets: (B,) int class indices  OR  (B, C) soft target distributions
    focal_alpha: (C,) per-class alpha (concrete config constant; baked into kernel)
    Returns a scalar float32 loss.
    """
    B, C = inputs.shape
    alpha = tuple(float(a) for a in np.asarray(focal_alpha, dtype=np.float32))
    assert len(alpha) == C

    # Lane-dense batch tiling: tile_b a multiple of 1024, as large as practical.
    tile_b = max(1024, min(_round_up(int(max_tile_b), 1024), _round_up(B, 1024)))
    B_pad = _round_up(B, tile_b)
    n_tiles = B_pad // tile_b
    mask_last = (B_pad != B)

    # One fused pad+transpose pass so the batch sits on the lane axis.  No f32
    # upcast here (the kernel casts in VMEM), so bf16 logits move at bf16 width.
    # TODO(synk): accept logits pre-laid-out as (C, B) upstream (or a free
    # (B,C)->(B*C/128,128) reshape plus in-kernel lane-group reductions) to remove
    # this remaining host-side HBM copy entirely.
    logits_t = jnp.pad(inputs, ((0, B_pad - B), (0, 0))).T                    # (C, B_pad)

    out_shape = jax.ShapeDtypeStruct((1, n_tiles * 128), jnp.float32)
    out_spec = pl.BlockSpec((1, 128), lambda i: (0, i))
    compiler_params = pltpu.CompilerParams(
        dimension_semantics=("parallel",),         # per-tile partials -> both TCs on v7x
        vmem_limit_bytes=32 * 1024 * 1024,         # headroom under v5e's 16 MiB default
    )

    if targets.ndim == 1:
        tgt_lane = jnp.pad(targets.astype(jnp.int32), (0, B_pad - B)).reshape(1, B_pad)
        kern = functools.partial(
            focal_hard_kernel,
            alpha=alpha,
            gamma=float(focal_gamma),
            label_smoothing=float(label_smoothing),
            batch=int(B),
            tile_b=int(tile_b),
            mask_last=mask_last,
        )
        in_specs = [
            pl.BlockSpec((C, tile_b), lambda i: (0, i)),   # logits (C, B_pad)
            pl.BlockSpec((1, tile_b), lambda i: (0, i)),   # hard targets (1, B_pad)
        ]
        operands = (logits_t, tgt_lane)
    else:
        tgt_t = jnp.pad(targets, ((0, B_pad - B), (0, 0))).T                   # (C, B_pad)
        kern = functools.partial(
            focal_soft_kernel,
            alpha=alpha,
            gamma=float(focal_gamma),
            batch=int(B),
            tile_b=int(tile_b),
            mask_last=mask_last,
        )
        in_specs = [
            pl.BlockSpec((C, tile_b), lambda i: (0, i)),   # logits (C, B_pad)
            pl.BlockSpec((C, tile_b), lambda i: (0, i)),   # soft targets (C, B_pad)
        ]
        operands = (logits_t, tgt_t)

    partials = pl.pallas_call(
        kern,
        out_shape=out_shape,
        grid_spec=pltpu.PrefetchScalarGridSpec(
            num_scalar_prefetch=0,
            grid=(n_tiles,),
            in_specs=in_specs,
            out_specs=out_spec,
        ),
        compiler_params=compiler_params,
    )(*operands)

    # Tiny final reduction + mean in the wrapper (keeps the grid axis parallel).
    return jnp.sum(partials) * (1.0 / B)


# ----------------------------- reference (pure JAX) -----------------------
def _ref_loss(inputs, targets, alpha, gamma, ls):
    logp = jax.nn.log_softmax(inputs, axis=1)
    C = inputs.shape[1]
    if targets.ndim == 1:
        onehot = jax.nn.one_hot(targets, C)
        q = (1.0 - ls) * onehot + ls / C
        ce = -jnp.sum(q * logp, axis=1)
        pt = jnp.exp(-ce)
        alpha_t = alpha[targets]
    else:
        ce = -jnp.sum(targets * logp, axis=1)
        pt = jnp.sum(targets * jnp.exp(logp), axis=1)
        alpha_t = jnp.sum(targets * alpha[None, :], axis=1)
    return jnp.mean(alpha_t * (1.0 - pt) ** gamma * ce)


# ----------------------------- main ---------------------------------------
if __name__ == "__main__":
    cfg = Config()
    C = cfg.NUM_CLASSES
    alpha = jnp.asarray(cfg.FOCAL_ALPHA, dtype=jnp.float32)

    key = jax.random.PRNGKey(0)
    k1, k2, k3, k4, k5, k6, k7 = jax.random.split(key, 7)

    def check(name, loss, ref):
        loss = jax.block_until_ready(loss)
        assert jnp.allclose(loss, ref, rtol=1e-4, atol=1e-5), (name, loss, ref)

    # --- B=16: hard + soft targets (single tile, heavy tail masking) ---
    B = 16
    logits = jax.random.normal(k1, (B, C), dtype=jnp.float32)
    hard_targets = jax.random.randint(k2, (B,), 0, C, dtype=jnp.int32)
    soft_targets = jax.nn.softmax(jax.random.normal(k3, (B, C), dtype=jnp.float32), axis=1)

    check("hard16",
          advanced_loss(logits, hard_targets, alpha, cfg.FOCAL_GAMMA, cfg.LABEL_SMOOTHING),
          _ref_loss(logits, hard_targets, alpha, cfg.FOCAL_GAMMA, cfg.LABEL_SMOOTHING))
    check("soft16",
          advanced_loss(logits, soft_targets, alpha, cfg.FOCAL_GAMMA, cfg.LABEL_SMOOTHING),
          _ref_loss(logits, soft_targets, alpha, cfg.FOCAL_GAMMA, cfg.LABEL_SMOOTHING))

    # --- B=19: batch not divisible by anything (tail-mask path) ---
    B2 = 19
    logits2 = jax.random.normal(k4, (B2, C), dtype=jnp.float32)
    hard2 = jax.random.randint(k5, (B2,), 0, C, dtype=jnp.int32)
    check("hard19",
          advanced_loss(logits2, hard2, alpha, cfg.FOCAL_GAMMA, cfg.LABEL_SMOOTHING),
          _ref_loss(logits2, hard2, alpha, cfg.FOCAL_GAMMA, cfg.LABEL_SMOOTHING))

    # --- B=2100 with tile_b forced to 1024: multi-tile parallel partial sums + masked last tile ---
    B3 = 2100
    logits3 = jax.random.normal(k6, (B3, C), dtype=jnp.float32)
    hard3 = jax.random.randint(k2, (B3,), 0, C, dtype=jnp.int32)
    soft3 = jax.nn.softmax(jax.random.normal(k3, (B3, C), dtype=jnp.float32), axis=1)
    check("hard2100",
          advanced_loss(logits3, hard3, alpha, cfg.FOCAL_GAMMA, cfg.LABEL_SMOOTHING,
                        max_tile_b=1024),
          _ref_loss(logits3, hard3, alpha, cfg.FOCAL_GAMMA, cfg.LABEL_SMOOTHING))
    check("soft2100",
          advanced_loss(logits3, soft3, alpha, cfg.FOCAL_GAMMA, cfg.LABEL_SMOOTHING,
                        max_tile_b=1024),
          _ref_loss(logits3, soft3, alpha, cfg.FOCAL_GAMMA, cfg.LABEL_SMOOTHING))

    # --- B=2048 exact multiple of the tile: unmasked (mask_last=False) fast path ---
    B4 = 2048
    logits4 = jax.random.normal(k7, (B4, C), dtype=jnp.float32)
    hard4 = jax.random.randint(k5, (B4,), 0, C, dtype=jnp.int32)
    check("hard2048",
          advanced_loss(logits4, hard4, alpha, cfg.FOCAL_GAMMA, cfg.LABEL_SMOOTHING,
                        max_tile_b=1024),
          _ref_loss(logits4, hard4, alpha, cfg.FOCAL_GAMMA, cfg.LABEL_SMOOTHING))

    print("KERNEL_OK")
</pallas_src>

<mosaic_0001>
module attributes {stable_mosaic.version = 11 : i64} {
  func.func @focal_hard_kernel(%arg0: i32, %arg1: memref<8x1024xf32, #tpu.memory_space<vmem>>, %arg2: memref<1x1024xi32, #tpu.memory_space<vmem>>, %arg3: memref<1x128xf32, #tpu.memory_space<vmem>>) attributes {dimension_semantics = [#tpu.dimension_semantics<parallel>], iteration_bounds = array<i64: 1>, scalar_prefetch = 0 : i64, scratch_operands = 0 : i64, tpu.core_type = #tpu.core_type<tc>, window_params = [{transform_indices = @transform_0, window_bounds = array<i64: 8, 1024>}, {transform_indices = @transform_1, window_bounds = array<i64: 1, 1024>}, {transform_indices = @transform_2, window_bounds = array<i64: 1, 128>}]} {
    %c0 = arith.constant 0 : index
    %c0_0 = arith.constant 0 : index
    %0 = vector.load %arg1[%c0, %c0_0] : memref<8x1024xf32, #tpu.memory_space<vmem>>, vector<8x1024xf32>
    %c0_1 = arith.constant 0 : index
    %c0_2 = arith.constant 0 : index
    %1 = vector.load %arg2[%c0_1, %c0_2] : memref<1x1024xi32, #tpu.memory_space<vmem>>, vector<1x1024xi32>
    %cst = arith.constant dense<0xFF800000> : vector<1024xf32>
    %2 = vector.multi_reduction <maximumf>, %0, %cst [0] : vector<8x1024xf32> to vector<1024xf32>
    %3 = vector.shape_cast %2 : vector<1024xf32> to vector<1x1024xf32>
    %4 = vector.broadcast %3 : vector<1x1024xf32> to vector<8x1024xf32>
    %5 = arith.subf %0, %4 : vector<8x1024xf32>
    %6 = math.exp %5 : vector<8x1024xf32>
    %cst_3 = arith.constant dense<0.000000e+00> : vector<1024xf32>
    %7 = vector.multi_reduction <add>, %6, %cst_3 [0] : vector<8x1024xf32> to vector<1024xf32>
    %8 = vector.shape_cast %7 : vector<1024xf32> to vector<1x1024xf32>
    %9 = math.log %8 : vector<1x1024xf32>
    %10 = arith.addf %3, %9 : vector<1x1024xf32>
    %11 = tpu.iota {dimensions = array<i32: 0>} : vector<8x1024xi32>
    %12 = vector.broadcast %1 : vector<1x1024xi32> to vector<8x1024xi32>
    %13 = arith.cmpi eq, %11, %12 : vector<8x1024xi32>
    %14 = arith.extui %13 : vector<8x1024xi1> to vector<8x1024xi32>
    %15 = arith.sitofp %14 : vector<8x1024xi32> to vector<8x1024xf32>
    %16 = arith.mulf %15, %0 : vector<8x1024xf32>
    %cst_4 = arith.constant dense<0.000000e+00> : vector<1024xf32>
    %17 = vector.multi_reduction <add>, %16, %cst_4 [0] : vector<8x1024xf32> to vector<1024xf32>
    %18 = vector.shape_cast %17 : vector<1024xf32> to vector<1x1024xf32>
    %cst_5 = arith.constant dense<0.000000e+00> : vector<1024xf32>
    %19 = vector.multi_reduction <add>, %0, %cst_5 [0] : vector<8x1024xf32> to vector<1024xf32>
    %20 = vector.shape_cast %19 : vector<1024xf32> to vector<1x1024xf32>
    %cst_6 = arith.constant 2.500000e-01 : f32
    %21 = vector.broadcast %cst_6 : f32 to vector<1x1024xf32>
    %c1_i32 = arith.constant 1 : i32
    %22 = vector.broadcast %c1_i32 : i32 to vector<1x1024xi32>
    %23 = arith.cmpi eq, %1, %22 : vector<1x1024xi32>
    %cst_7 = arith.constant 5.000000e-01 : f32
    %24 = vector.broadcast %cst_7 : f32 to vector<1x1024xf32>
    %25 = arith.select %23, %24, %21 : vector<1x1024xi1>, vector<1x1024xf32>
    %c2_i32 = arith.constant 2 : i32
    %26 = vector.broadcast %c2_i32 : i32 to vector<1x1024xi32>
    %27 = arith.cmpi eq, %1, %26 : vector<1x1024xi32>
    %cst_8 = arith.constant 7.500000e-01 : f32
    %28 = vector.broadcast %cst_8 : f32 to vector<1x1024xf32>
    %29 = arith.select %27, %28, %25 : vector<1x1024xi1>, vector<1x1024xf32>
    %c3_i32 = arith.constant 3 : i32
    %30 = vector.broadcast %c3_i32 : i32 to vector<1x1024xi32>
    %31 = arith.cmpi eq, %1, %30 : vector<1x1024xi32>
    %cst_9 = arith.constant 1.000000e+00 : f32
    %32 = vector.broadcast %cst_9 : f32 to vector<1x1024xf32>
    %33 = arith.select %31, %32, %29 : vector<1x1024xi1>, vector<1x1024xf32>
    %c4_i32 = arith.constant 4 : i32
    %34 = vector.broadcast %c4_i32 : i32 to vector<1x1024xi32>
    %35 = arith.cmpi eq, %1, %34 : vector<1x1024xi32>
    %cst_10 = arith.constant 2.500000e-01 : f32
    %36 = vector.broadcast %cst_10 : f32 to vector<1x1024xf32>
    %37 = arith.select %35, %36, %33 : vector<1x1024xi1>, vector<1x1024xf32>
    %c5_i32 = arith.constant 5 : i32
    %38 = vector.broadcast %c5_i32 : i32 to vector<1x1024xi32>
    %39 = arith.cmpi eq, %1, %38 : vector<1x1024xi32>
    %cst_11 = arith.constant 5.000000e-01 : f32
    %40 = vector.broadcast %cst_11 : f32 to vector<1x1024xf32>
    %41 = arith.select %39, %40, %37 : vector<1x1024xi1>, vector<1x1024xf32>
    %c6_i32 = arith.constant 6 : i32
    %42 = vector.broadcast %c6_i32 : i32 to vector<1x1024xi32>
    %43 = arith.cmpi eq, %1, %42 : vector<1x1024xi32>
    %cst_12 = arith.constant 7.500000e-01 : f32
    %44 = vector.broadcast %cst_12 : f32 to vector<1x1024xf32>
    %45 = arith.select %43, %44, %41 : vector<1x1024xi1>, vector<1x1024xf32>
    %c7_i32 = arith.constant 7 : i32
    %46 = vector.broadcast %c7_i32 : i32 to vector<1x1024xi32>
    %47 = arith.cmpi eq, %1, %46 : vector<1x1024xi32>
    %cst_13 = arith.constant 1.000000e+00 : f32
    %48 = vector.broadcast %cst_13 : f32 to vector<1x1024xf32>
    %49 = arith.select %47, %48, %45 : vector<1x1024xi1>, vector<1x1024xf32>
    %cst_14 = arith.constant 0.899999976 : f32
    %50 = vector.broadcast %cst_14 : f32 to vector<1x1024xf32>
    %51 = arith.mulf %50, %18 : vector<1x1024xf32>
    %52 = arith.subf %10, %51 : vector<1x1024xf32>
    %cst_15 = arith.constant 1.250000e-02 : f32
    %53 = vector.broadcast %cst_15 : f32 to vector<1x1024xf32>
    %54 = arith.mulf %53, %20 : vector<1x1024xf32>
    %55 = arith.subf %52, %54 : vector<1x1024xf32>
    %cst_16 = arith.constant 0.000000e+00 : f32
    %56 = vector.broadcast %cst_16 : f32 to vector<1x1024xf32>
    %57 = arith.subf %56, %55 : vector<1x1024xf32>
    %58 = math.exp %57 : vector<1x1024xf32>
    %cst_17 = arith.constant 1.000000e+00 : f32
    %59 = vector.broadcast %cst_17 : f32 to vector<1x1024xf32>
    %60 = arith.subf %59, %58 : vector<1x1024xf32>
    %cst_18 = arith.constant 0.000000e+00 : f32
    %61 = vector.broadcast %cst_18 : f32 to vector<1x1024xf32>
    %62 = arith.maximumf %60, %61 : vector<1x1024xf32>
    %63 = arith.mulf %62, %62 : vector<1x1024xf32>
    %64 = arith.mulf %49, %63 : vector<1x1024xf32>
    %65 = arith.mulf %64, %55 : vector<1x1024xf32>
    %c0_i32 = arith.constant 0 : i32
    %66 = arith.cmpi eq, %arg0, %c0_i32 : i32
    %67 = arith.extui %66 : i1 to i32
    %c0_i32_19 = arith.constant 0 : i32
    %68 = arith.cmpi ne, %67, %c0_i32_19 : i32
    scf.if %68 {
      %c1024_i32 = arith.constant 1024 : i32
      %72 = arith.muli %arg0, %c1024_i32 : i32
      %73 = tpu.iota {dimensions = array<i32: 1>} : vector<1x1024xi32>
      %74 = vector.broadcast %72 : i32 to vector<1x1024xi32>
      %75 = arith.addi %74, %73 : vector<1x1024xi32>
      %c16_i32 = arith.constant 16 : i32
      %76 = vector.broadcast %c16_i32 : i32 to vector<1x1024xi32>
      %77 = arith.cmpi slt, %75, %76 : vector<1x1024xi32>
      %cst_22 = arith.constant 0.000000e+00 : f32
      %78 = vector.broadcast %cst_22 : f32 to vector<1x1024xf32>
      %79 = arith.select %77, %65, %78 : vector<1x1024xi1>, vector<1x1024xf32>
      %cst_23 = arith.constant dense<0.000000e+00> : vector<1xf32>
      %80 = vector.multi_reduction <add>, %79, %cst_23 [1] : vector<1x1024xf32> to vector<1xf32>
      %81 = vector.shape_cast %80 : vector<1xf32> to vector<1x1xf32>
      %82 = tpu.iota {dimensions = array<i32: 1>} : vector<1x128xi32>
      %c0_i32_24 = arith.constant 0 : i32
      %83 = vector.broadcast %c0_i32_24 : i32 to vector<1x128xi32>
      %84 = arith.cmpi eq, %82, %83 : vector<1x128xi32>
      %cst_25 = arith.constant 0.000000e+00 : f32
      %85 = vector.shape_cast %81 : vector<1x1xf32> to vector<1x1xf32>
      %86 = vector.broadcast %85 : vector<1x1xf32> to vector<1x128xf32>
      %87 = vector.broadcast %cst_25 : f32 to vector<1x128xf32>
      %88 = arith.select %84, %86, %87 : vector<1x128xi1>, vector<1x128xf32>
      %c0_26 = arith.constant 0 : index
      %c0_27 = arith.constant 0 : index
      %89 = vector.load %arg3[%c0_26, %c0_27] : memref<1x128xf32, #tpu.memory_space<vmem>>, vector<1x128xf32>
      tpu.vector_store %arg3[%c0_26, %c0_27], %88 {strides = array<i32>} : memref<1x128xf32, #tpu.memory_space<vmem>>, vector<1x128xf32>,
    } else {
    }
    %c0_i32_20 = arith.constant 0 : i32
    %69 = arith.cmpi ne, %arg0, %c0_i32_20 : i32
    %70 = arith.extui %69 : i1 to i32
    %c0_i32_21 = arith.constant 0 : i32
    %71 = arith.cmpi ne, %70, %c0_i32_21 : i32
    scf.if %71 {
      %cst_22 = arith.constant dense<0.000000e+00> : vector<1xf32>
      %72 = vector.multi_reduction <add>, %65, %cst_22 [1] : vector<1x1024xf32> to vector<1xf32>
      %73 = vector.shape_cast %72 : vector<1xf32> to vector<1x1xf32>
      %74 = tpu.iota {dimensions = array<i32: 1>} : vector<1x128xi32>
      %c0_i32_23 = arith.constant 0 : i32
      %75 = vector.broadcast %c0_i32_23 : i32 to vector<1x128xi32>
      %76 = arith.cmpi eq, %74, %75 : vector<1x128xi32>
      %cst_24 = arith.constant 0.000000e+00 : f32
      %77 = vector.shape_cast %73 : vector<1x1xf32> to vector<1x1xf32>
      %78 = vector.broadcast %77 : vector<1x1xf32> to vector<1x128xf32>
      %79 = vector.broadcast %cst_24 : f32 to vector<1x128xf32>
      %80 = arith.select %76, %78, %79 : vector<1x128xi1>, vector<1x128xf32>
      %c0_25 = arith.constant 0 : index
      %c0_26 = arith.constant 0 : index
      %81 = vector.load %arg3[%c0_25, %c0_26] : memref<1x128xf32, #tpu.memory_space<vmem>>, vector<1x128xf32>
      tpu.vector_store %arg3[%c0_25, %c0_26], %80 {strides = array<i32>} : memref<1x128xf32, #tpu.memory_space<vmem>>, vector<1x128xf32>,
    } else {
    }
    return
  }
  func.func @transform_0(%arg0: i32) -> (i32, i32) {
    %c0_i32 = arith.constant 0 : i32
    %c0_i32_0 = arith.constant 0 : i32
    return %c0_i32, %arg0 : i32, i32
  }
  func.func @transform_1(%arg0: i32) -> (i32, i32) {
    %c0_i32 = arith.constant 0 : i32
    %c0_i32_0 = arith.constant 0 : i32
    return %c0_i32, %arg0 : i32, i32
  }
  func.func @transform_2(%arg0: i32) -> (i32, i32) {
    %c0_i32 = arith.constant 0 : i32
    %c0_i32_0 = arith.constant 0 : i32
    return %c0_i32, %arg0 : i32, i32
  }
}

</mosaic_0001>

<llo_original>
// kernel: tpu_custom_call.1
$region0: #{tpu_custom_call.1}
  #allocation0 [shape = 'u32[]', space=smem, size = 0x4, offset = 0x4, fixed_abs, tag = 'smem constant byte address 0x4 - core index']
  #allocation1 [shape = 'u32[144,128]{1,0:T(1,128)}', space=vmem, size = 0x12000, scoped, tag = 'internal scratch']
  %s0 = inlined_call_operand.hbm [shape: f32[8,1024], index: 0, kind: input, shape index: {}]
  %s1 = inlined_call_operand.hbm [shape: s32[1,1024], index: 1, kind: input, shape index: {}]
  %s2 = inlined_call_operand.hbm [shape: f32[1,128], index: 2, kind: output, shape index: {}]
  %s3 = sld [smem:[#allocation0]]
  $region34: #{tpu_custom_call.1} parent=0
    _
  %s5 = ssub.s32 1, %s3
  %s6 = scalar_select 0, %s5, %s3
  $region1: #{tpu_custom_call.1} parent=0
    #allocation2 [shape = 'u8[32768]{0}', space=vmem, size = 0x8000, scoped, tag = 'input window, operand 0, single buffered']
    #allocation3 [shape = 's32[1]{0}', space=sflag, size = 0x4, scoped, tag = 'scoped memory for tpu_custom_call.1']
    #allocation4 [shape = 's32[1]{0}', space=sflag, size = 0x4, scoped, tag = 'scoped memory for tpu_custom_call.1']
    #allocation5 [shape = 'u8[4096]{0}', space=vmem, size = 0x1000, scoped, tag = 'input window, operand 1, single buffered']
    #allocation6 [shape = 's32[1]{0}', space=sflag, size = 0x4, scoped, tag = 'scoped memory for tpu_custom_call.1']
    #allocation7 [shape = 'u8[512]{0}', space=vmem, size = 0x400, scoped, tag = 'output window, operand 0, single buffered']
    %7 = vsyncpa [#allocation3], 0
    %8 = vsyncpa [#allocation6], 0
    %9 = vsyncpa [#allocation4], 0
    // Predicated region
    $region2: #{tpu_custom_call.1} parent=1 // pred_check
      _
    $region3: #{tpu_custom_call.1} parent=1 // pred_check_branch
      %11 = sbr.rel (0) target = $region5
    $region4: #{tpu_custom_call.1} parent=1 // pred_region
      %s13 = ssub.s32 1024, 1024
      %14 = vsyncadd [#allocation3], %s13
      %s16 = sshll.u32 [#allocation2], 4
      %s17 = int_to_ptr.vmem [resolvable:$true] %s16
      %19 = dma.hbm_to_vmem [thread:$0]  %s0, 1024, %s17, [#allocation3]
    $region5: #{tpu_custom_call.1} parent=1 // pred_fallthru
      _
    // Predicated region
    $region6: #{tpu_custom_call.1} parent=1 // pred_check
      _
    $region7: #{tpu_custom_call.1} parent=1 // pred_check_branch
      %21 = sbr.rel (0) target = $region9
    $region8: #{tpu_custom_call.1} parent=1 // pred_region
      %s23 = ssub.s32 128, 128
      %24 = vsyncadd [#allocation6], %s23
      %s26 = sshll.u32 [#allocation5], 4
      %s27 = int_to_ptr.vmem [resolvable:$true] %s26
      %29 = dma.hbm_to_vmem [thread:$0]  %s1, 128, %s27, [#allocation6]
    $region9: #{tpu_custom_call.1} parent=1 // pred_fallthru
      _
    // Predicated region
    $region10: #{tpu_custom_call.1} parent=1 // pred_check
      _
    $region11: #{tpu_custom_call.1} parent=1 // pred_check_branch
      %31 = sbr.rel (0) target = $region13
    $region12: #{tpu_custom_call.1} parent=1 // pred_region
      %32 = dma.done [#allocation3], 1024
    $region13: #{tpu_custom_call.1} parent=1 // pred_fallthru
      _
    // Predicated region
    $region14: #{tpu_custom_call.1} parent=1 // pred_check
      _
    $region15: #{tpu_custom_call.1} parent=1 // pred_check_branch
      %34 = sbr.rel (0) target = $region17
    $region16: #{tpu_custom_call.1} parent=1 // pred_region
      %35 = dma.done [#allocation6], 128
    $region17: #{tpu_custom_call.1} parent=1 // pred_fallthru
      _
    %v36 = vld [vmem:[#allocation2] sm:$0xff]
    %v37 = vld [vmem:[#allocation2 + $0x8] sm:$0xff]
    %v38 = vld [vmem:[#allocation2 + $0x10] sm:$0xff]
    %v39 = vld [vmem:[#allocation2 + $0x18] sm:$0xff]
    %v40 = vld [vmem:[#allocation2 + $0x20] sm:$0xff]
    %v41 = vld [vmem:[#allocation2 + $0x28] sm:$0xff]
    %v42 = vld [vmem:[#allocation2 + $0x30] sm:$0xff]
    %v43 = vld [vmem:[#allocation2 + $0x38] sm:$0xff]
    %v44 = vld [vmem:[#allocation5] sm:$0xff]
    %v45 = vrot.slane %v36, 4
    %v46 = vmax.f32 %v36, %v45
    %v47 = vrot.slane %v46, 2
    %v48 = vmax.f32 %v46, %v47
    %v49 = vrot.slane %v48, 1
    %v50 = vmax.f32 %v48, %v49
    %v51 = vrot.slane %v37, 4
    %v52 = vmax.f32 %v37, %v51
    %v53 = vrot.slane %v52, 2
    %v54 = vmax.f32 %v52, %v53
    %v55 = vrot.slane %v54, 1
    %v56 = vmax.f32 %v54, %v55
    %v57 = vrot.slane %v38, 4
    %v58 = vmax.f32 %v38, %v57
    %v59 = vrot.slane %v58, 2
    %v60 = vmax.f32 %v58, %v59
    %v61 = vrot.slane %v60, 1
    %v62 = vmax.f32 %v60, %v61
    %v63 = vrot.slane %v39, 4
    %v64 = vmax.f32 %v39, %v63
    %v65 = vrot.slane %v64, 2
    %v66 = vmax.f32 %v64, %v65
    %v67 = vrot.slane %v66, 1
    %v68 = vmax.f32 %v66, %v67
    %v69 = vrot.slane %v40, 4
    %v70 = vmax.f32 %v40, %v69
    %v71 = vrot.slane %v70, 2
    %v72 = vmax.f32 %v70, %v71
    %v73 = vrot.slane %v72, 1
    %v74 = vmax.f32 %v72, %v73
    %v75 = vrot.slane %v41, 4
    %v76 = vmax.f32 %v41, %v75
    %v77 = vrot.slane %v76, 2
    %v78 = vmax.f32 %v76, %v77
    %v79 = vrot.slane %v78, 1
    %v80 = vmax.f32 %v78, %v79
    %v81 = vrot.slane %v42, 4
    %v82 = vmax.f32 %v42, %v81
    %v83 = vrot.slane %v82, 2
    %v84 = vmax.f32 %v82, %v83
    %v85 = vrot.slane %v84, 1
    %v86 = vmax.f32 %v84, %v85
    %v87 = vrot.slane %v43, 4
    %v88 = vmax.f32 %v43, %v87
    %v89 = vrot.slane %v88, 2
    %v90 = vmax.f32 %v88, %v89
    %v91 = vrot.slane %v90, 1
    %v92 = vmax.f32 %v90, %v91
    %v93 = vsub.f32 %v36, %v50
    %v94 = vsub.f32 %v37, %v56
    %v95 = vsub.f32 %v38, %v62
    %v96 = vsub.f32 %v39, %v68
    %v97 = vsub.f32 %v40, %v74
    %v98 = vsub.f32 %v41, %v80
    %v99 = vsub.f32 %v42, %v86
    %v100 = vsub.f32 %v43, %v92
    %v101 = vmul.f32 %v93, 1.442695
    %v102 = vpow.pop %v101
    %v103 = vmul.f32 %v94, 1.442695
    %v104 = vpow.pop %v103
    %v105 = vmul.f32 %v95, 1.442695
    %v106 = vpow.pop %v105
    %v107 = vmul.f32 %v96, 1.442695
    %v108 = vpow.pop %v107
    %v109 = vmul.f32 %v97, 1.442695
    %v110 = vpow.pop %v109
    %v111 = vmul.f32 %v98, 1.442695
    %v112 = vpow.pop %v111
    %v113 = vmul.f32 %v99, 1.442695
    %v114 = vpow.pop %v113
    %v115 = vmul.f32 %v100, 1.442695
    %v116 = vpow.pop %v115
    %v117 = vrot.slane %v102, 4
    %v118 = vadd.f32 %v102, %v117
    %v119 = vrot.slane %v118, 2
    %v120 = vadd.f32 %v118, %v119
    %v121 = vrot.slane %v120, 1
    %v122 = vadd.f32 %v120, %v121
    %v123 = vrot.slane %v104, 4
    %v124 = vadd.f32 %v104, %v123
    %v125 = vrot.slane %v124, 2
    %v126 = vadd.f32 %v124, %v125
    %v127 = vrot.slane %v126, 1
    %v128 = vadd.f32 %v126, %v127
    %v129 = vrot.slane %v106, 4
    %v130 = vadd.f32 %v106, %v129
    %v131 = vrot.slane %v130, 2
    %v132 = vadd.f32 %v130, %v131
    %v133 = vrot.slane %v132, 1
    %v134 = vadd.f32 %v132, %v133
    %v135 = vrot.slane %v108, 4
    %v136 = vadd.f32 %v108, %v135
    %v137 = vrot.slane %v136, 2
    %v138 = vadd.f32 %v136, %v137
    %v139 = vrot.slane %v138, 1
    %v140 = vadd.f32 %v138, %v139
    %v141 = vrot.slane %v110, 4
    %v142 = vadd.f32 %v110, %v141
    %v143 = vrot.slane %v142, 2
    %v144 = vadd.f32 %v142, %v143
    %v145 = vrot.slane %v144, 1
    %v146 = vadd.f32 %v144, %v145
    %v147 = vrot.slane %v112, 4
    %v148 = vadd.f32 %v112, %v147
    %v149 = vrot.slane %v148, 2
    %v150 = vadd.f32 %v148, %v149
    %v151 = vrot.slane %v150, 1
    %v152 = vadd.f32 %v150, %v151
    %v153 = vrot.slane %v114, 4
    %v154 = vadd.f32 %v114, %v153
    %v155 = vrot.slane %v154, 2
    %v156 = vadd.f32 %v154, %v155
    %v157 = vrot.slane %v156, 1
    %v158 = vadd.f32 %v156, %v157
    %v159 = vrot.slane %v116, 4
    %v160 = vadd.f32 %v116, %v159
    %v161 = vrot.slane %v160, 2
    %v162 = vadd.f32 %v160, %v161
    %v163 = vrot.slane %v162, 1
    %v164 = vadd.f32 %v162, %v163
    %v165 = vlog2.pop %v122
    %v166 = vmul.f32 %v165, 0.6931472
    %v167 = vlog2.pop %v128
    %v168 = vmul.f32 %v167, 0.6931472
    %v169 = vlog2.pop %v134
    %v170 = vmul.f32 %v169, 0.6931472
    %v171 = vlog2.pop %v140
    %v172 = vmul.f32 %v171, 0.6931472
    %v173 = vlog2.pop %v146
    %v174 = vmul.f32 %v173, 0.6931472
    %v175 = vlog2.pop %v152
    %v176 = vmul.f32 %v175, 0.6931472
    %v177 = vlog2.pop %v158
    %v178 = vmul.f32 %v177, 0.6931472
    %v179 = vlog2.pop %v164
    %v180 = vmul.f32 %v179, 0.6931472
    %v181 = vadd.f32 %v50, %v166
    %v182 = vadd.f32 %v56, %v168
    %v183 = vadd.f32 %v62, %v170
    %v184 = vadd.f32 %v68, %v172
    %v185 = vadd.f32 %v74, %v174
    %v186 = vadd.f32 %v80, %v176
    %v187 = vadd.f32 %v86, %v178
    %v188 = vadd.f32 %v92, %v180
    %v189 = vlaneseq
    %v190 = vshrl.u32 %v189, 7
    %v191 = vlaneseq
    %v192 = vshrl.u32 %v191, 7
    %v193 = vsub.s32 0, %v192
    %v194 = vrot.slane %v44, %v193
    %v195 = vlaneseq
    %v196 = vshrl.u32 %v195, 7
    %v197 = vsub.s32 1, %v196
    %v198 = vrot.slane %v44, %v197
    %v199 = vlaneseq
    %v200 = vshrl.u32 %v199, 7
    %v201 = vsub.s32 2, %v200
    %v202 = vrot.slane %v44, %v201
    %v203 = vlaneseq
    %v204 = vshrl.u32 %v203, 7
    %v205 = vsub.s32 3, %v204
    %v206 = vrot.slane %v44, %v205
    %v207 = vlaneseq
    %v208 = vshrl.u32 %v207, 7
    %v209 = vsub.s32 4, %v208
    %v210 = vrot.slane %v44, %v209
    %v211 = vlaneseq
    %v212 = vshrl.u32 %v211, 7
    %v213 = vsub.s32 5, %v212
    %v214 = vrot.slane %v44, %v213
    %v215 = vlaneseq
    %v216 = vshrl.u32 %v215, 7
    %v217 = vsub.s32 6, %v216
    %v218 = vrot.slane %v44, %v217
    %v219 = vlaneseq
    %v220 = vshrl.u32 %v219, 7
    %v221 = vsub.s32 7, %v220
    %v222 = vrot.slane %v44, %v221
    %vm223 = vcmp.eq.s32.totalorder %v190, %v194
    %vm224 = vcmp.eq.s32.totalorder %v190, %v198
    %vm225 = vcmp.eq.s32.totalorder %v190, %v202
    %vm226 = vcmp.eq.s32.totalorder %v190, %v206
    %vm227 = vcmp.eq.s32.totalorder %v190, %v210
    %vm228 = vcmp.eq.s32.totalorder %v190, %v214
    %vm229 = vcmp.eq.s32.totalorder %v190, %v218
    %vm230 = vcmp.eq.s32.totalorder %v190, %v222
    %v231 = vsel %vm223, 1, 0
    %v232 = vsel %vm224, 1, 0
    %v233 = vsel %vm225, 1, 0
    %v234 = vsel %vm226, 1, 0
    %v235 = vsel %vm227, 1, 0
    %v236 = vsel %vm228, 1, 0
    %v237 = vsel %vm229, 1, 0
    %v238 = vsel %vm230, 1, 0
    %v239 = vcvt.s32.f32 %v231
    %v240 = vcvt.s32.f32 %v232
    %v241 = vcvt.s32.f32 %v233
    %v242 = vcvt.s32.f32 %v234
    %v243 = vcvt.s32.f32 %v235
    %v244 = vcvt.s32.f32 %v236
    %v245 = vcvt.s32.f32 %v237
    %v246 = vcvt.s32.f32 %v238
    %v247 = vmul.f32 %v239, %v36
    %v248 = vmul.f32 %v240, %v37
    %v249 = vmul.f32 %v241, %v38
    %v250 = vmul.f32 %v242, %v39
    %v251 = vmul.f32 %v243, %v40
    %v252 = vmul.f32 %v244, %v41
    %v253 = vmul.f32 %v245, %v42
    %v254 = vmul.f32 %v246, %v43
    %v255 = vrot.slane %v247, 4
    %v256 = vadd.f32 %v247, %v255
    %v257 = vrot.slane %v256, 2
    %v258 = vadd.f32 %v256, %v257
    %v259 = vrot.slane %v258, 1
    %v260 = vadd.f32 %v258, %v259
    %v261 = vrot.slane %v248, 4
    %v262 = vadd.f32 %v248, %v261
    %v263 = vrot.slane %v262, 2
    %v264 = vadd.f32 %v262, %v263
    %v265 = vrot.slane %v264, 1
    %v266 = vadd.f32 %v264, %v265
    %v267 = vrot.slane %v249, 4
    %v268 = vadd.f32 %v249, %v267
    %v269 = vrot.slane %v268, 2
    %v270 = vadd.f32 %v268, %v269
    %v271 = vrot.slane %v270, 1
    %v272 = vadd.f32 %v270, %v271
    %v273 = vrot.slane %v250, 4
    %v274 = vadd.f32 %v250, %v273
    %v275 = vrot.slane %v274, 2
    %v276 = vadd.f32 %v274, %v275
    %v277 = vrot.slane %v276, 1
    %v278 = vadd.f32 %v276, %v277
    %v279 = vrot.slane %v251, 4
    %v280 = vadd.f32 %v251, %v279
    %v281 = vrot.slane %v280, 2
    %v282 = vadd.f32 %v280, %v281
    %v283 = vrot.slane %v282, 1
    %v284 = vadd.f32 %v282, %v283
    %v285 = vrot.slane %v252, 4
    %v286 = vadd.f32 %v252, %v285
    %v287 = vrot.slane %v286, 2
    %v288 = vadd.f32 %v286, %v287
    %v289 = vrot.slane %v288, 1
    %v290 = vadd.f32 %v288, %v289
    %v291 = vrot.slane %v253, 4
    %v292 = vadd.f32 %v253, %v291
    %v293 = vrot.slane %v292, 2
    %v294 = vadd.f32 %v292, %v293
    %v295 = vrot.slane %v294, 1
    %v296 = vadd.f32 %v294, %v295
    %v297 = vrot.slane %v254, 4
    %v298 = vadd.f32 %v254, %v297
    %v299 = vrot.slane %v298, 2
    %v300 = vadd.f32 %v298, %v299
    %v301 = vrot.slane %v300, 1
    %v302 = vadd.f32 %v300, %v301
    %v303 = vrot.slane %v36, 4
    %v304 = vadd.f32 %v36, %v303
    %v305 = vrot.slane %v304, 2
    %v306 = vadd.f32 %v304, %v305
    %v307 = vrot.slane %v306, 1
    %v308 = vadd.f32 %v306, %v307
    %v309 = vrot.slane %v37, 4
    %v310 = vadd.f32 %v37, %v309
    %v311 = vrot.slane %v310, 2
    %v312 = vadd.f32 %v310, %v311
    %v313 = vrot.slane %v312, 1
    %v314 = vadd.f32 %v312, %v313
    %v315 = vrot.slane %v38, 4
    %v316 = vadd.f32 %v38, %v315
    %v317 = vrot.slane %v316, 2
    %v318 = vadd.f32 %v316, %v317
    %v319 = vrot.slane %v318, 1
    %v320 = vadd.f32 %v318, %v319
    %v321 = vrot.slane %v39, 4
    %v322 = vadd.f32 %v39, %v321
    %v323 = vrot.slane %v322, 2
    %v324 = vadd.f32 %v322, %v323
    %v325 = vrot.slane %v324, 1
    %v326 = vadd.f32 %v324, %v325
    %v327 = vrot.slane %v40, 4
    %v328 = vadd.f32 %v40, %v327
    %v329 = vrot.slane %v328, 2
    %v330 = vadd.f32 %v328, %v329
    %v331 = vrot.slane %v330, 1
    %v332 = vadd.f32 %v330, %v331
    %v333 = vrot.slane %v41, 4
    %v334 = vadd.f32 %v41, %v333
    %v335 = vrot.slane %v334, 2
    %v336 = vadd.f32 %v334, %v335
    %v337 = vrot.slane %v336, 1
    %v338 = vadd.f32 %v336, %v337
    %v339 = vrot.slane %v42, 4
    %v340 = vadd.f32 %v42, %v339
    %v341 = vrot.slane %v340, 2
    %v342 = vadd.f32 %v340, %v341
    %v343 = vrot.slane %v342, 1
    %v344 = vadd.f32 %v342, %v343
    %v345 = vrot.slane %v43, 4
    %v346 = vadd.f32 %v43, %v345
    %v347 = vrot.slane %v346, 2
    %v348 = vadd.f32 %v346, %v347
    %v349 = vrot.slane %v348, 1
    %v350 = vadd.f32 %v348, %v349
    %vm351 = vcmp.eq.s32.totalorder %v44, 1
    %v352 = vsel %vm351, 0.5, 0.25
    %vm353 = vcmp.eq.s32.totalorder %v44, 2
    %v354 = vsel %vm353, 0.75, %v352
    %vm355 = vcmp.eq.s32.totalorder %v44, 3
    %v356 = vsel %vm355, 1.0, %v354
    %vm357 = vcmp.eq.s32.totalorder %v44, 4
    %v358 = vsel %vm357, 0.25, %v356
    %vm359 = vcmp.eq.s32.totalorder %v44, 5
    %v360 = vsel %vm359, 0.5, %v358
    %vm361 = vcmp.eq.s32.totalorder %v44, 6
    %v362 = vsel %vm361, 0.75, %v360
    %vm363 = vcmp.eq.s32.totalorder %v44, 7
    %v364 = vsel %vm363, 1.0, %v362
    %v365 = vmul.f32 %v260, 0.9
    %v366 = vmul.f32 %v266, 0.9
    %v367 = vmul.f32 %v272, 0.9
    %v368 = vmul.f32 %v278, 0.9
    %v369 = vmul.f32 %v284, 0.9
    %v370 = vmul.f32 %v290, 0.9
    %v371 = vmul.f32 %v296, 0.9
    %v372 = vmul.f32 %v302, 0.9
    %v373 = vsub.f32 %v181, %v365
    %v374 = vsub.f32 %v182, %v366
    %v375 = vsub.f32 %v183, %v367
    %v376 = vsub.f32 %v184, %v368
    %v377 = vsub.f32 %v185, %v369
    %v378 = vsub.f32 %v186, %v370
    %v379 = vsub.f32 %v187, %v371
    %v380 = vsub.f32 %v188, %v372
    %v381 = vmul.f32 %v308, 0.0125
    %v382 = vmul.f32 %v314, 0.0125
    %v383 = vmul.f32 %v320, 0.0125
    %v384 = vmul.f32 %v326, 0.0125
    %v385 = vmul.f32 %v332, 0.0125
    %v386 = vmul.f32 %v338, 0.0125
    %v387 = vmul.f32 %v344, 0.0125
    %v388 = vmul.f32 %v350, 0.0125
    %v389 = vsub.f32 %v373, %v381
    %v390 = vsub.f32 %v374, %v382
    %v391 = vsub.f32 %v375, %v383
    %v392 = vsub.f32 %v376, %v384
    %v393 = vsub.f32 %v377, %v385
    %v394 = vsub.f32 %v378, %v386
    %v395 = vsub.f32 %v379, %v387
    %v396 = vsub.f32 %v380, %v388
    %v397 = vsub.f32 0.0, %v389
    %v398 = vsub.f32 0.0, %v390
    %v399 = vsub.f32 0.0, %v391
    %v400 = vsub.f32 0.0, %v392
    %v401 = vsub.f32 0.0, %v393
    %v402 = vsub.f32 0.0, %v394
    %v403 = vsub.f32 0.0, %v395
    %v404 = vsub.f32 0.0, %v396
    %v405 = vmul.f32 %v397, 1.442695
    %v406 = vpow.pop %v405
    %v407 = vmul.f32 %v398, 1.442695
    %v408 = vpow.pop %v407
    %v409 = vmul.f32 %v399, 1.442695
    %v410 = vpow.pop %v409
    %v411 = vmul.f32 %v400, 1.442695
    %v412 = vpow.pop %v411
    %v413 = vmul.f32 %v401, 1.442695
    %v414 = vpow.pop %v413
    %v415 = vmul.f32 %v402, 1.442695
    %v416 = vpow.pop %v415
    %v417 = vmul.f32 %v403, 1.442695
    %v418 = vpow.pop %v417
    %v419 = vmul.f32 %v404, 1.442695
    %v420 = vpow.pop %v419
    %v421 = vsub.f32 1.0, %v406
    %v422 = vsub.f32 1.0, %v408
    %v423 = vsub.f32 1.0, %v410
    %v424 = vsub.f32 1.0, %v412
    %v425 = vsub.f32 1.0, %v414
    %v426 = vsub.f32 1.0, %v416
    %v427 = vsub.f32 1.0, %v418
    %v428 = vsub.f32 1.0, %v420
    %v429 = vmax.f32 %v421, 0.0
    %v430 = vmax.f32 %v422, 0.0
    %v431 = vmax.f32 %v423, 0.0
    %v432 = vmax.f32 %v424, 0.0
    %v433 = vmax.f32 %v425, 0.0
    %v434 = vmax.f32 %v426, 0.0
    %v435 = vmax.f32 %v427, 0.0
    %v436 = vmax.f32 %v428, 0.0
    %v437 = vmul.f32 %v429, %v429
    %v438 = vmul.f32 %v430, %v430
    %v439 = vmul.f32 %v431, %v431
    %v440 = vmul.f32 %v432, %v432
    %v441 = vmul.f32 %v433, %v433
    %v442 = vmul.f32 %v434, %v434
    %v443 = vmul.f32 %v435, %v435
    %v444 = vmul.f32 %v436, %v436
    %v453 = vcombine.low %v437, %v438
    %v454 = vcombine.low %v439, %v440
    %v455 = vcombine.low %v441, %v442
    %v456 = vcombine.low %v443, %v444
    %v458 = vunpack.c.l.s4 1966171168
    %v459 = vunpack.c.0.s8 %v458
    %v460 = vlaneseq
    %v461 = vshrl.u32 %v460, 7
    %v462 = vsub.s32 %v459, %v461
    %v463 = vrot.slane %v453, %v462
    %v465 = vunpack.c.l.s4 1966171168
    %v466 = vunpack.c.0.s8 %v465
    %v467 = vlaneseq
    %v468 = vshrl.u32 %v467, 7
    %v469 = vsub.s32 %v466, %v468
    %v470 = vrot.slane %v454, %v469
    %v472 = vunpack.c.l.s4 1966171168
    %v473 = vunpack.c.0.s8 %v472
    %v474 = vlaneseq
    %v475 = vshrl.u32 %v474, 7
    %v476 = vsub.s32 %v473, %v475
    %v477 = vrot.slane %v455, %v476
    %v479 = vunpack.c.l.s4 1966171168
    %v480 = vunpack.c.0.s8 %v479
    %v481 = vlaneseq
    %v482 = vshrl.u32 %v481, 7
    %v483 = vsub.s32 %v480, %v482
    %v484 = vrot.slane %v456, %v483
    %v485 = vcombine.low %v463, %v470
    %v486 = vcombine.low %v477, %v484
    %v488 = vunpack.c.l.s4 1966171168
    %v489 = vunpack.c.0.s8 %v488
    %v490 = vlaneseq
    %v491 = vshrl.u32 %v490, 7
    %v492 = vsub.s32 %v489, %v491
    %v493 = vrot.slane %v485, %v492
    %v495 = vunpack.c.l.s4 1966171168
    %v496 = vunpack.c.0.s8 %v495
    %v497 = vlaneseq
    %v498 = vshrl.u32 %v497, 7
    %v499 = vsub.s32 %v496, %v498
    %v500 = vrot.slane %v486, %v499
    %v501 = vcombine.low %v493, %v500
    %v503 = vmul.f32 %v364, %v501
    %v512 = vcombine.low %v389, %v390
    %v513 = vcombine.low %v391, %v392
    %v514 = vcombine.low %v393, %v394
    %v515 = vcombine.low %v395, %v396
    %v517 = vunpack.c.l.s4 1966171168
    %v518 = vunpack.c.0.s8 %v517
    %v519 = vlaneseq
    %v520 = vshrl.u32 %v519, 7
    %v521 = vsub.s32 %v518, %v520
    %v522 = vrot.slane %v512, %v521
    %v524 = vunpack.c.l.s4 1966171168
    %v525 = vunpack.c.0.s8 %v524
    %v526 = vlaneseq
    %v527 = vshrl.u32 %v526, 7
    %v528 = vsub.s32 %v525, %v527
    %v529 = vrot.slane %v513, %v528
    %v531 = vunpack.c.l.s4 1966171168
    %v532 = vunpack.c.0.s8 %v531
    %v533 = vlaneseq
    %v534 = vshrl.u32 %v533, 7
    %v535 = vsub.s32 %v532, %v534
    %v536 = vrot.slane %v514, %v535
    %v538 = vunpack.c.l.s4 1966171168
    %v539 = vunpack.c.0.s8 %v538
    %v540 = vlaneseq
    %v541 = vshrl.u32 %v540, 7
    %v542 = vsub.s32 %v539, %v541
    %v543 = vrot.slane %v515, %v542
    %v544 = vcombine.low %v522, %v529
    %v545 = vcombine.low %v536, %v543
    %v547 = vunpack.c.l.s4 1966171168
    %v548 = vunpack.c.0.s8 %v547
    %v549 = vlaneseq
    %v550 = vshrl.u32 %v549, 7
    %v551 = vsub.s32 %v548, %v550
    %v552 = vrot.slane %v544, %v551
    %v554 = vunpack.c.l.s4 1966171168
    %v555 = vunpack.c.0.s8 %v554
    %v556 = vlaneseq
    %v557 = vshrl.u32 %v556, 7
    %v558 = vsub.s32 %v555, %v557
    %v559 = vrot.slane %v545, %v558
    %v560 = vcombine.low %v552, %v559
    %v562 = vmul.f32 %v503, %v560
    %p563 = scmp.eq.s32.totalorder 0, 0
    // Predicated region
    $region18: #{tpu_custom_call.1} parent=1 // pred_check
      %p564 = pneg %p563
    $region19: #{tpu_custom_call.1} parent=1 // pred_check_branch
      %566 = sbr.rel (%p564) target = $region21
    $region20: #{tpu_custom_call.1} parent=1 // pred_region
      %s567 = smul.u32 0, 1024
      %v568 = vlaneseq
      %v569 = vand.u32 %v568, 127
      %v570 = vadd.s32 %v569, 128
      %v571 = vadd.s32 %v569, 256
      %v572 = vadd.s32 %v569, 384
      %v573 = vadd.s32 %v569, 512
      %v574 = vadd.s32 %v569, 640
      %v575 = vadd.s32 %v569, 768
      %v576 = vadd.s32 %v569, 896
      %v577 = vstv %s567
      %v578 = vadd.s32 %v577, %v569
      %v579 = vadd.s32 %v577, %v570
      %v580 = vadd.s32 %v577, %v571
      %v581 = vadd.s32 %v577, %v572
      %v582 = vadd.s32 %v577, %v573
      %v583 = vadd.s32 %v577, %v574
      %v584 = vadd.s32 %v577, %v575
      %v585 = vadd.s32 %v577, %v576
      %vm586 = vcmp.lt.s32.totalorder %v578, 16
      %vm587 = vcmp.lt.s32.totalorder %v579, 16
      %vm588 = vcmp.lt.s32.totalorder %v580, 16
      %vm589 = vcmp.lt.s32.totalorder %v581, 16
      %vm590 = vcmp.lt.s32.totalorder %v582, 16
      %vm591 = vcmp.lt.s32.totalorder %v583, 16
      %vm592 = vcmp.lt.s32.totalorder %v584, 16
      %vm593 = vcmp.lt.s32.totalorder %v585, 16
      %v595 = vlaneseq
      %v596 = vshrl.u32 %v595, 7
      %v597 = vsub.s32 0, %v596
      %v598 = vrot.slane %v562, %v597
      %v599 = vlaneseq
      %v600 = vshrl.u32 %v599, 7
      %v601 = vsub.s32 1, %v600
      %v602 = vrot.slane %v562, %v601
      %v603 = vlaneseq
      %v604 = vshrl.u32 %v603, 7
      %v605 = vsub.s32 2, %v604
      %v606 = vrot.slane %v562, %v605
      %v607 = vlaneseq
      %v608 = vshrl.u32 %v607, 7
      %v609 = vsub.s32 3, %v608
      %v610 = vrot.slane %v562, %v609
      %v611 = vlaneseq
      %v612 = vshrl.u32 %v611, 7
      %v613 = vsub.s32 4, %v612
      %v614 = vrot.slane %v562, %v613
      %v615 = vlaneseq
      %v616 = vshrl.u32 %v615, 7
      %v617 = vsub.s32 5, %v616
      %v618 = vrot.slane %v562, %v617
      %v619 = vlaneseq
      %v620 = vshrl.u32 %v619, 7
      %v621 = vsub.s32 6, %v620
      %v622 = vrot.slane %v562, %v621
      %v623 = vlaneseq
      %v624 = vshrl.u32 %v623, 7
      %v625 = vsub.s32 7, %v624
      %v626 = vrot.slane %v562, %v625
      %v635 = vsel %vm586, %v598, 0.0
      %v636 = vsel %vm587, %v602, 0.0
      %v637 = vsel %vm588, %v606, 0.0
      %v638 = vsel %vm589, %v610, 0.0
      %v639 = vsel %vm590, %v614, 0.0
      %v640 = vsel %vm591, %v618, 0.0
      %v641 = vsel %vm592, %v622, 0.0
      %v642 = vsel %vm593, %v626, 0.0
      %vm643 = vcmask 1040384
      %v644 = vsel %vm643, %v635, 0.0
      %v645 = vsel %vm643, %v636, 0.0
      %v646 = vadd.f32 %v644, %v645
      %v647 = vsel %vm643, %v637, 0.0
      %v648 = vadd.f32 %v646, %v647
      %v649 = vsel %vm643, %v638, 0.0
      %v650 = vadd.f32 %v648, %v649
      %v651 = vsel %vm643, %v639, 0.0
      %v652 = vadd.f32 %v650, %v651
      %v653 = vsel %vm643, %v640, 0.0
      %v654 = vadd.f32 %v652, %v653
      %v655 = vsel %vm643, %v641, 0.0
      %v656 = vadd.f32 %v654, %v655
      %v657 = vsel %vm643, %v642, 0.0
      %v658 = vadd.f32 %v656, %v657
      %659 = vadd.xlane.f32.xlu0 %v658
      %v660 = vpop.xlane.xlu0 %659
      %vm661 = vcmp.eq.s32.totalorder %v569, 0
      %v662 = vsel %vm661, %v660, 0.0
      %663 = vst [vmem:[#allocation7] sm:$0x1] %v662
    $region21: #{tpu_custom_call.1} parent=1 // pred_fallthru
      _
    %p664 = scmp.ne.s32.totalorder 0, 0
    // Predicated region
    $region22: #{tpu_custom_call.1} parent=1 // pred_check
      %p665 = pneg %p664
    $region23: #{tpu_custom_call.1} parent=1 // pred_check_branch
      %667 = sbr.rel (%p665) target = $region25
    $region24: #{tpu_custom_call.1} parent=1 // pred_region
      %v669 = vlaneseq
      %v670 = vshrl.u32 %v669, 7
      %v671 = vsub.s32 0, %v670
      %v672 = vrot.slane %v562, %v671
      %v673 = vlaneseq
      %v674 = vshrl.u32 %v673, 7
      %v675 = vsub.s32 1, %v674
      %v676 = vrot.slane %v562, %v675
      %v677 = vlaneseq
      %v678 = vshrl.u32 %v677, 7
      %v679 = vsub.s32 2, %v678
      %v680 = vrot.slane %v562, %v679
      %v681 = vlaneseq
      %v682 = vshrl.u32 %v681, 7
      %v683 = vsub.s32 3, %v682
      %v684 = vrot.slane %v562, %v683
      %v685 = vlaneseq
      %v686 = vshrl.u32 %v685, 7
      %v687 = vsub.s32 4, %v686
      %v688 = vrot.slane %v562, %v687
      %v689 = vlaneseq
      %v690 = vshrl.u32 %v689, 7
      %v691 = vsub.s32 5, %v690
      %v692 = vrot.slane %v562, %v691
      %v693 = vlaneseq
      %v694 = vshrl.u32 %v693, 7
      %v695 = vsub.s32 6, %v694
      %v696 = vrot.slane %v562, %v695
      %v697 = vlaneseq
      %v698 = vshrl.u32 %v697, 7
      %v699 = vsub.s32 7, %v698
      %v700 = vrot.slane %v562, %v699
      %vm709 = vcmask 1040384
      %v710 = vsel %vm709, %v672, 0.0
      %v711 = vsel %vm709, %v676, 0.0
      %v712 = vadd.f32 %v710, %v711
      %v713 = vsel %vm709, %v680, 0.0
      %v714 = vadd.f32 %v712, %v713
      %v715 = vsel %vm709, %v684, 0.0
      %v716 = vadd.f32 %v714, %v715
      %v717 = vsel %vm709, %v688, 0.0
      %v718 = vadd.f32 %v716, %v717
      %v719 = vsel %vm709, %v692, 0.0
      %v720 = vadd.f32 %v718, %v719
      %v721 = vsel %vm709, %v696, 0.0
      %v722 = vadd.f32 %v720, %v721
      %v723 = vsel %vm709, %v700, 0.0
      %v724 = vadd.f32 %v722, %v723
      %725 = vadd.xlane.f32.xlu0 %v724
      %v726 = vpop.xlane.xlu0 %725
      %v727 = vlaneseq
      %v728 = vand.u32 %v727, 127
      %vm729 = vcmp.eq.s32.totalorder %v728, 0
      %v730 = vsel %vm729, %v726, 0.0
      %731 = vst [vmem:[#allocation7] sm:$0x1] %v730
    $region25: #{tpu_custom_call.1} parent=1 // pred_fallthru
      _
    // Predicated region
    $region26: #{tpu_custom_call.1} parent=1 // pred_check
      _
    $region27: #{tpu_custom_call.1} parent=1 // pred_check_branch
      %733 = sbr.rel (0) target = $region29
    $region28: #{tpu_custom_call.1} parent=1 // pred_region
      %s735 = ssub.s32 16, 16
      %736 = vsyncadd [#allocation4], %s735
      %s738 = sshll.u32 [#allocation7], 4
      %s739 = int_to_ptr.vmem [resolvable:$true] %s738
      %741 = dma.vmem_to_hbm [thread:$0]  %s739, 16, %s2, [#allocation4]
    $region29: #{tpu_custom_call.1} parent=1 // pred_fallthru
      _
    // Predicated region
    $region30: #{tpu_custom_call.1} parent=1 // pred_check
      _
    $region31: #{tpu_custom_call.1} parent=1 // pred_check_branch
      %743 = sbr.rel (0) target = $region33
    $region32: #{tpu_custom_call.1} parent=1 // pred_region
      %744 = dma.done [#allocation4], 16
    $region33: #{tpu_custom_call.1} parent=1 // pred_fallthru
      _
    %745 = vsyncpa [#allocation3], 1
    %746 = vsyncpa [#allocation6], 1
    %747 = vsyncpa [#allocation4], 1

</llo_original>
